<compile_context>
chip_gen: v7x
topology: tpu7x:2x2x1
jax: 0.10.0
libtpu: 0.0.40
codegen_flags: <defaults>
</compile_context>

<pallas_src>
import jax
import jax.numpy as jnp
from jax.experimental import pallas as pl
from jax.experimental.pallas import tpu as pltpu


# ----------------------------------------------------------------------------- kernel
def policy_net_kernel(x_ref, w1_ref, b1_ref, w2t_ref, b2_ref, w3t_ref, b3_ref,
                      o_ref):
    # x_ref : (TM, 256)  activation tile (f32 or bf16)
    # w1    : (256, 32)  (in, out) layout, compute dtype
    # b1    : (1, 32)    f32
    # w2t   : (16, 32)   torch (out, in) layout, compute dtype
    # b2    : (16, 1)    f32
    # w3t   : (4, 16)    torch (out, in) layout, compute dtype
    # b3    : (4, 1)     f32
    # o_ref : (4, TM)    lane-dense output (batch in the lane dimension), f32
    cdt = w1_ref.dtype                      # MXU operand dtype (bf16 or f32)
    x = x_ref[...].astype(cdt)              # (TM, 256)

    # fc1: (TM,256) @ (256,32) -> (TM,32), f32 accumulate, bias + ReLU in f32.
    h1 = jnp.dot(x, w1_ref[...], preferred_element_type=jnp.float32)
    h1 = jnp.maximum(h1 + b1_ref[...], 0.0)                       # (TM, 32)

    # Batch-in-lanes from here on: fc2 contracts h1 on its feature axis so the
    # result is (16, TM) — full MXU output width N = TM, lane-dense intermediate.
    h2t = jax.lax.dot_general(
        w2t_ref[...], h1.astype(cdt),
        dimension_numbers=(((1,), (1,)), ((), ())),
        preferred_element_type=jnp.float32)                       # (16, TM)
    h2t = jnp.maximum(h2t + b2_ref[...], 0.0)                     # bias (16,1)

    # fc3: plain (4,16) @ (16,TM) -> (4,TM); output already lane-dense.
    o_t = jnp.dot(w3t_ref[...], h2t.astype(cdt),
                  preferred_element_type=jnp.float32)
    o_ref[...] = o_t + b3_ref[...]                                # bias (4,1)


# ----------------------------------------------------------------------------- wrappers
_PALLAS_MIN_BATCH = 128            # below this, fused XLA wins (launch latency)
_TILE_CANDIDATES = (1024, 512, 256, 128)


def _pick_tile(batch):
    """Largest tile that still leaves >= 2 grid steps (keeps both v7x
    TensorCores busy via dimension_semantics=("parallel",))."""
    for tm in _TILE_CANDIDATES:
        if pl.cdiv(batch, tm) >= 2:
            return tm
    return _TILE_CANDIDATES[-1]


def _xla_forward(x2d, params):
    """Small-batch / single-sample path: three tiny GEMVs, fused by XLA."""
    w1, b1, w2t, b2, w3t, b3 = params
    P = jax.lax.Precision.HIGHEST
    x = x2d.astype(jnp.float32)
    h1 = jnp.maximum(jnp.dot(x, w1, precision=P) + b1, 0.0)
    h2 = jnp.maximum(jnp.dot(h1, w2t.T, precision=P) + b2[:, 0], 0.0)
    return jnp.dot(h2, w3t.T, precision=P) + b3[:, 0]


def policy_net_forward_batched(x, params, *, compute_dtype=jnp.bfloat16):
    """x: (B, ...) with 256 trailing elements per sample. Returns (B, 4) f32.

    compute_dtype is the MXU operand dtype (bf16 recommended on v6e/v7x);
    accumulation is always f32. Supply x already in bf16 to also halve the
    dominant HBM activation stream (no extra cast pass is inserted here).
    """
    w1, b1, w2t, b2, w3t, b3 = params
    batch = x.shape[0]
    x2d = x.reshape(batch, -1)
    if x2d.shape[1] != 256:
        raise ValueError(f"each sample must flatten to 256 elems, got {x2d.shape[1]}")

    if batch < _PALLAS_MIN_BATCH:
        # Latency path (e.g. action selection): pallas launch + DMA overhead
        # dominates; let XLA fuse the three GEMVs into one VPU pass.
        return _xla_forward(x2d, params)

    # Keep activations in their native dtype (no whole-batch copy / pad).
    if x2d.dtype not in (jnp.float32, jnp.bfloat16):
        x2d = x2d.astype(jnp.float32)

    tm = _pick_tile(batch)
    grid = (pl.cdiv(batch, tm),)           # ragged last tile is masked by Pallas

    cdt = jnp.dtype(compute_dtype)
    out_t = pl.pallas_call(
        policy_net_kernel,
        out_shape=jax.ShapeDtypeStruct((4, batch), jnp.float32),
        grid=grid,
        in_specs=[
            pl.BlockSpec((tm, 256), lambda i: (i, 0)),   # activations: tiled over batch
            pl.BlockSpec((256, 32), lambda i: (0, 0)),   # w1  resident in VMEM
            pl.BlockSpec((1, 32),   lambda i: (0, 0)),   # b1  resident
            pl.BlockSpec((16, 32),  lambda i: (0, 0)),   # w2t resident
            pl.BlockSpec((16, 1),   lambda i: (0, 0)),   # b2  resident
            pl.BlockSpec((4, 16),   lambda i: (0, 0)),   # w3t resident
            pl.BlockSpec((4, 1),    lambda i: (0, 0)),   # b3  resident
        ],
        out_specs=pl.BlockSpec((4, tm), lambda i: (0, i)),   # lane-dense output
        compiler_params=pltpu.CompilerParams(
            dimension_semantics=("parallel",)),
    )(x2d,
      w1.astype(cdt), b1.astype(jnp.float32),
      w2t.astype(cdt), b2.astype(jnp.float32),
      w3t.astype(cdt), b3.astype(jnp.float32))

    return out_t.T                                        # (B, 4)


def policy_net_forward(x, params):
    """Exact module semantics: flatten ALL dims (must be 256 elems) -> (4,).
    Routed to the fused XLA path per the perf review (B=1 is latency-bound)."""
    flat = x.reshape(-1)
    if flat.shape[0] != 256:
        raise ValueError(f"PolicyNet expects 256 flattened elements, got {flat.shape[0]}")
    return _xla_forward(flat.reshape(1, 256), params)[0]


# ----------------------------------------------------------------------------- params / reference
def init_params(key):
    """nn.Linear-style init, stored in the layouts the kernel wants:
       w1 (in,out)=(256,32); w2t/w3t torch (out,in)=(16,32)/(4,16);
       b1 as a (1,32) row; b2/b3 as (16,1)/(4,1) columns (batch-in-lanes)."""
    k1, k2, k3, k4, k5, k6 = jax.random.split(key, 6)

    def lin(kw, kb, fan_in, fan_out):
        bound = 1.0 / jnp.sqrt(fan_in)
        w = jax.random.uniform(kw, (fan_out, fan_in), jnp.float32, -bound, bound)
        b = jax.random.uniform(kb, (fan_out, 1), jnp.float32, -bound, bound)
        return w, b

    w1, b1 = lin(k1, k2, 256, 32)          # torch layout (32,256)
    w2, b2 = lin(k3, k4, 32, 16)           # (16,32)
    w3, b3 = lin(k5, k6, 16, 4)            # (4,16)
    return (w1.T, b1.T, w2, b2, w3, b3)    # w1:(256,32), b1:(1,32), w2t, b2:(16,1), w3t, b3:(4,1)


def reference_batched(x2d, params, dot_dtype=jnp.float32):
    """Pure-JAX reference with the same operand-dtype / f32-accumulate recipe."""
    w1, b1, w2t, b2, w3t, b3 = params
    cd = jnp.dtype(dot_dtype)
    if cd == jnp.dtype(jnp.float32):
        dot = lambda a, b: jnp.dot(a.astype(cd), b.astype(cd),
                                   precision=jax.lax.Precision.HIGHEST,
                                   preferred_element_type=jnp.float32)
    else:
        dot = lambda a, b: jnp.dot(a.astype(cd), b.astype(cd),
                                   preferred_element_type=jnp.float32)
    h1 = jnp.maximum(dot(x2d, w1) + b1, 0.0)
    h2 = jnp.maximum(dot(h1, w2t.T) + b2[:, 0], 0.0)
    return dot(h2, w3t.T) + b3[:, 0]


# ----------------------------------------------------------------------------- test
if __name__ == "__main__":
    key = jax.random.PRNGKey(0)
    kp, kx1, kx2, kx3 = jax.random.split(key, 4)
    params = init_params(kp)

    # 1) Exact original-module semantics: a single 16x16 observation -> (4,).
    #    (B=1 action selection goes through the fused XLA path by design.)
    x_single = jax.random.normal(kx1, (16, 16), dtype=jnp.float32)
    q1 = jax.block_until_ready(policy_net_forward(x_single, params))
    ref1 = reference_batched(x_single.reshape(1, 256), params)[0]
    assert q1.shape == (4,)
    assert jnp.allclose(q1, ref1, atol=1e-4, rtol=1e-4)

    # 2) DQN minibatch, f32 MXU operands: exercises the Pallas kernel with
    #    tm=256, a 2-step parallel grid and a ragged (masked) last tile.
    B1 = 300
    xb = jax.random.normal(kx2, (B1, 16, 16), dtype=jnp.float32)
    qb = jax.block_until_ready(
        policy_net_forward_batched(xb, params, compute_dtype=jnp.float32))
    refb = reference_batched(xb.reshape(B1, 256), params, dot_dtype=jnp.float32)
    assert qb.shape == (B1, 4)
    assert jnp.allclose(qb, refb, atol=1e-3, rtol=1e-3)

    # 3) Larger batch, bf16 MXU operands end-to-end (activations supplied in
    #    bf16, halving the dominant HBM stream): tm=1024, 2-step grid, ragged tail.
    B2 = 1200
    xc = jax.random.normal(kx3, (B2, 256), dtype=jnp.float32).astype(jnp.bfloat16)
    qc = jax.block_until_ready(
        policy_net_forward_batched(xc, params, compute_dtype=jnp.bfloat16))
    refc = reference_batched(xc, params, dot_dtype=jnp.bfloat16)
    assert qc.shape == (B2, 4)
    assert jnp.allclose(qc, refc, atol=2e-2, rtol=2e-2)

    print("KERNEL_OK")
</pallas_src>

<mosaic_0001>
module attributes {stable_mosaic.version = 11 : i64} {
  func.func @policy_net_kernel(%arg0: i32, %arg1: memref<256x256xf32, #tpu.memory_space<vmem>>, %arg2: memref<256x32xf32, #tpu.memory_space<vmem>>, %arg3: memref<1x32xf32, #tpu.memory_space<vmem>>, %arg4: memref<16x32xf32, #tpu.memory_space<vmem>>, %arg5: memref<16x1xf32, #tpu.memory_space<vmem>>, %arg6: memref<4x16xf32, #tpu.memory_space<vmem>>, %arg7: memref<4x1xf32, #tpu.memory_space<vmem>>, %arg8: memref<4x256xf32, #tpu.memory_space<vmem>>) attributes {dimension_semantics = [#tpu.dimension_semantics<parallel>], iteration_bounds = array<i64: 2>, scalar_prefetch = 0 : i64, scratch_operands = 0 : i64, tpu.core_type = #tpu.core_type<tc>, window_params = [{transform_indices = @transform_0, window_bounds = array<i64: 256, 256>}, {pipeline_mode = #tpu.pipeline_mode<synchronous>, transform_indices = @transform_1, window_bounds = array<i64: 256, 32>}, {pipeline_mode = #tpu.pipeline_mode<synchronous>, transform_indices = @transform_2, window_bounds = array<i64: 1, 32>}, {pipeline_mode = #tpu.pipeline_mode<synchronous>, transform_indices = @transform_3, window_bounds = array<i64: 16, 32>}, {pipeline_mode = #tpu.pipeline_mode<synchronous>, transform_indices = @transform_4, window_bounds = array<i64: 16, 1>}, {pipeline_mode = #tpu.pipeline_mode<synchronous>, transform_indices = @transform_5, window_bounds = array<i64: 4, 16>}, {pipeline_mode = #tpu.pipeline_mode<synchronous>, transform_indices = @transform_6, window_bounds = array<i64: 4, 1>}, {transform_indices = @transform_7, window_bounds = array<i64: 4, 256>}]} {
    %c0 = arith.constant 0 : index
    %c0_0 = arith.constant 0 : index
    %0 = vector.load %arg1[%c0, %c0_0] : memref<256x256xf32, #tpu.memory_space<vmem>>, vector<256x256xf32>
    %c0_1 = arith.constant 0 : index
    %c0_2 = arith.constant 0 : index
    %1 = vector.load %arg2[%c0_1, %c0_2] : memref<256x32xf32, #tpu.memory_space<vmem>>, vector<256x32xf32>
    %cst = arith.constant dense<0.000000e+00> : vector<256x32xf32>
    %2 = tpu.matmul %0, %1, %cst {dimension_numbers = #tpu.dot_dimension_numbers<[1], [0], [0], [1], [0, 0, 1, 1], [], []>} : vector<256x256xf32>, vector<256x32xf32>, vector<256x32xf32> -> vector<256x32xf32>
    %c0_3 = arith.constant 0 : index
    %c0_4 = arith.constant 0 : index
    %3 = vector.load %arg3[%c0_3, %c0_4] : memref<1x32xf32, #tpu.memory_space<vmem>>, vector<1x32xf32>
    %4 = vector.broadcast %3 : vector<1x32xf32> to vector<256x32xf32>
    %5 = arith.addf %2, %4 : vector<256x32xf32>
    %cst_5 = arith.constant 0.000000e+00 : f32
    %6 = vector.broadcast %cst_5 : f32 to vector<256x32xf32>
    %7 = arith.maximumf %5, %6 : vector<256x32xf32>
    %c0_6 = arith.constant 0 : index
    %c0_7 = arith.constant 0 : index
    %8 = vector.load %arg4[%c0_6, %c0_7] : memref<16x32xf32, #tpu.memory_space<vmem>>, vector<16x32xf32>
    %cst_8 = arith.constant dense<0.000000e+00> : vector<16x256xf32>
    %9 = tpu.matmul %8, %7, %cst_8 {dimension_numbers = #tpu.dot_dimension_numbers<[1], [1], [0], [0], [0, 0, 1, 0], [], []>} : vector<16x32xf32>, vector<256x32xf32>, vector<16x256xf32> -> vector<16x256xf32>
    %c0_9 = arith.constant 0 : index
    %c0_10 = arith.constant 0 : index
    %10 = vector.load %arg5[%c0_9, %c0_10] : memref<16x1xf32, #tpu.memory_space<vmem>>, vector<16x1xf32>
    %11 = vector.broadcast %10 : vector<16x1xf32> to vector<16x256xf32>
    %12 = arith.addf %9, %11 : vector<16x256xf32>
    %cst_11 = arith.constant 0.000000e+00 : f32
    %13 = vector.broadcast %cst_11 : f32 to vector<16x256xf32>
    %14 = arith.maximumf %12, %13 : vector<16x256xf32>
    %c0_12 = arith.constant 0 : index
    %c0_13 = arith.constant 0 : index
    %15 = vector.load %arg6[%c0_12, %c0_13] : memref<4x16xf32, #tpu.memory_space<vmem>>, vector<4x16xf32>
    %cst_14 = arith.constant dense<0.000000e+00> : vector<4x256xf32>
    %16 = tpu.matmul %15, %14, %cst_14 {dimension_numbers = #tpu.dot_dimension_numbers<[1], [0], [0], [1], [0, 0, 1, 1], [], []>} : vector<4x16xf32>, vector<16x256xf32>, vector<4x256xf32> -> vector<4x256xf32>
    %c0_15 = arith.constant 0 : index
    %c0_16 = arith.constant 0 : index
    %17 = vector.load %arg7[%c0_15, %c0_16] : memref<4x1xf32, #tpu.memory_space<vmem>>, vector<4x1xf32>
    %18 = vector.broadcast %17 : vector<4x1xf32> to vector<4x256xf32>
    %19 = arith.addf %16, %18 : vector<4x256xf32>
    %c0_17 = arith.constant 0 : index
    %c0_18 = arith.constant 0 : index
    %20 = vector.load %arg8[%c0_17, %c0_18] : memref<4x256xf32, #tpu.memory_space<vmem>>, vector<4x256xf32>
    tpu.vector_store %arg8[%c0_17, %c0_18], %19 {strides = array<i32>} : memref<4x256xf32, #tpu.memory_space<vmem>>, vector<4x256xf32>,
    return
  }
  func.func @transform_0(%arg0: i32) -> (i32, i32) {
    %c0_i32 = arith.constant 0 : i32
    %c0_i32_0 = arith.constant 0 : i32
    return %arg0, %c0_i32 : i32, i32
  }
  func.func @transform_1(%arg0: i32) -> (i32, i32) {
    %c0_i32 = arith.constant 0 : i32
    %c0_i32_0 = arith.constant 0 : i32
    %c0_i32_1 = arith.constant 0 : i32
    return %c0_i32, %c0_i32_0 : i32, i32
  }
  func.func @transform_2(%arg0: i32) -> (i32, i32) {
    %c0_i32 = arith.constant 0 : i32
    %c0_i32_0 = arith.constant 0 : i32
    %c0_i32_1 = arith.constant 0 : i32
    return %c0_i32, %c0_i32_0 : i32, i32
  }
  func.func @transform_3(%arg0: i32) -> (i32, i32) {
    %c0_i32 = arith.constant 0 : i32
    %c0_i32_0 = arith.constant 0 : i32
    %c0_i32_1 = arith.constant 0 : i32
    return %c0_i32, %c0_i32_0 : i32, i32
  }
  func.func @transform_4(%arg0: i32) -> (i32, i32) {
    %c0_i32 = arith.constant 0 : i32
    %c0_i32_0 = arith.constant 0 : i32
    %c0_i32_1 = arith.constant 0 : i32
    return %c0_i32, %c0_i32_0 : i32, i32
  }
  func.func @transform_5(%arg0: i32) -> (i32, i32) {
    %c0_i32 = arith.constant 0 : i32
    %c0_i32_0 = arith.constant 0 : i32
    %c0_i32_1 = arith.constant 0 : i32
    return %c0_i32, %c0_i32_0 : i32, i32
  }
  func.func @transform_6(%arg0: i32) -> (i32, i32) {
    %c0_i32 = arith.constant 0 : i32
    %c0_i32_0 = arith.constant 0 : i32
    %c0_i32_1 = arith.constant 0 : i32
    return %c0_i32, %c0_i32_0 : i32, i32
  }
  func.func @transform_7(%arg0: i32) -> (i32, i32) {
    %c0_i32 = arith.constant 0 : i32
    %c0_i32_0 = arith.constant 0 : i32
    return %c0_i32, %arg0 : i32, i32
  }
}

</mosaic_0001>

<llo_original>
// kernel: tpu_custom_call.1
$region0: #{tpu_custom_call.1}
  #allocation0 [shape = 'u32[]', space=smem, size = 0x4, offset = 0x4, fixed_abs, tag = 'smem constant byte address 0x4 - core index']
  #allocation1 [shape = 'u32[144,128]{1,0:T(1,128)}', space=vmem, size = 0x12000, scoped, tag = 'internal scratch']
  %s0 = inlined_call_operand.hbm [shape: f32[300,256], index: 0, kind: input, shape index: {}]
  %s1 = inlined_call_operand.vmem [shape: f32[256,32], index: 1, kind: input, shape index: {}]
  %s2 = inlined_call_operand.vmem [shape: f32[1,32], index: 2, kind: input, shape index: {}]
  %s3 = inlined_call_operand.vmem [shape: f32[16,32], index: 3, kind: input, shape index: {}]
  %s4 = inlined_call_operand.vmem [shape: f32[16,1], index: 4, kind: input, shape index: {}]
  %s5 = inlined_call_operand.vmem [shape: f32[4,16], index: 5, kind: input, shape index: {}]
  %s6 = inlined_call_operand.vmem [shape: f32[4,1], index: 6, kind: input, shape index: {}]
  %s7 = inlined_call_operand.hbm [shape: f32[4,300], index: 7, kind: output, shape index: {}]
  %s8 = sld [smem:[#allocation0]]
  $region65: #{tpu_custom_call.1} parent=0
    _
  %s10 = ssub.s32 1, %s8
  %s11 = scalar_select 0, %s10, %s8
  $region1: #{tpu_custom_call.1} parent=0
    #allocation2 [shape = 'u8[524288]{0}', space=vmem, size = 0x80000, scoped, tag = 'input window, operand 0']
    #allocation3 [shape = 's32[2]{0}', space=sflag, size = 0x8, scoped, tag = 'scoped memory for tpu_custom_call.1']
    #allocation4 [shape = 's32[2]{0}', space=sflag, size = 0x8, scoped, tag = 'scoped memory for tpu_custom_call.1']
    #allocation5 [shape = 'u8[8192]{0}', space=vmem, size = 0x2000, scoped, tag = 'output window, operand 0']
    %12 = vsyncpa [#allocation3], 0
    %s13 = scalar_lea.sflag [#allocation3], 1
    %14 = vsyncpa %s13, 0
    %15 = vsyncpa [#allocation4], 0
    %s16 = scalar_lea.sflag [#allocation4], 1
    %17 = vsyncpa %s16, 0
    loop: start=0, step=1, limit=4
    $region2: #{tpu_custom_call.1} parent=1 // loop_pre_header
      _
    $region3: #{tpu_custom_call.1} parent=1 // loop_header
      %s19 = sphi 0, %s23
      %p20 = scmp.ge.s32.totalorder %s19, 4
      %s29 = sphi 0, %s31
      %s32 = sphi 0, %s29
      %s33 = sphi 0, %s32
      %s49 = sphi 0, %s33
      %s53 = sphi 0, %s53
      %s55 = sphi 0, %s53
      %s56 = sphi 0, %s55
      %s70 = sphi 0, %s56
      %s74 = sphi 0, %s74
      %s76 = sphi 0, %s74
      %s77 = sphi 0, %s76
      %s91 = sphi 0, %s77
      %s95 = sphi 0, %s95
      %s97 = sphi 0, %s95
      %s98 = sphi 0, %s97
      %s112 = sphi 0, %s98
      %s116 = sphi 0, %s116
      %s118 = sphi 0, %s116
      %s119 = sphi 0, %s118
      %s133 = sphi 0, %s119
      %s137 = sphi 0, %s137
      %s139 = sphi 0, %s137
      %s140 = sphi 0, %s139
      %s154 = sphi 0, %s140
      %s158 = sphi 0, %s158
      %s160 = sphi 0, %s158
      %s161 = sphi 0, %s160
      %s175 = sphi 0, %s161
      %s181 = sphi 0, %s183
      %s184 = sphi 0, %s181
      %s185 = sphi 0, %s184
      %s201 = sphi 0, %s185
    $region4: #{tpu_custom_call.1} parent=1 // loop_header_branch
      %22 = sbr.rel (%p20) target = $region8
    $region5: #{tpu_custom_call.1} parent=1 // loop_body
      %s24 = ssub.s32 %s19, 1
      %s25 = ssub.s32 %s19, 2
      %s26 = sadd.s32 %s19, 1
      %s27 = ssub.s32 %s19, %s26
      %p28 = scmp.eq.s32.totalorder %s27, 0
      %s30 = sadd.s32 %s29, 1
      %s31 = scalar_select %p28, %s29, %s30
      %p34 = pneg %p28
      %p35 = scmp.eq.s32.totalorder %s19, 1
      %p36 = por %p34, %p35
      %p37 = scmp.ne.s32.totalorder %s29, %s32
      %p38 = scmp.eq.s32.totalorder %s19, 0
      %p39 = por %p37, %p38
      %p40 = scmp.ne.s32.totalorder %s29, %s32
      %p41 = scmp.eq.s32.totalorder %s24, 1
      %p42 = por %p40, %p41
      %p43 = scmp.ne.s32.totalorder %s32, %s33
      %p44 = scmp.eq.s32.totalorder %s24, 0
      %p45 = por %p43, %p44
      %p46 = scmp.ne.s32.totalorder %s32, %s33
      %p47 = scmp.eq.s32.totalorder %s25, 1
      %p48 = por %p46, %p47
      %p50 = scmp.ne.s32.totalorder %s33, %s49
      %p51 = scmp.eq.s32.totalorder %s25, 0
      %p52 = por %p50, %p51
      %s54 = sadd.s32 %s53, 1
      %p57 = scmp.eq.s32.totalorder %s19, 1
      %p58 = scmp.ne.s32.totalorder %s53, %s55
      %p59 = scmp.eq.s32.totalorder %s19, 0
      %p60 = por %p58, %p59
      %p61 = scmp.ne.s32.totalorder %s53, %s55
      %p62 = scmp.eq.s32.totalorder %s24, 1
      %p63 = por %p61, %p62
      %p64 = scmp.ne.s32.totalorder %s55, %s56
      %p65 = scmp.eq.s32.totalorder %s24, 0
      %p66 = por %p64, %p65
      %p67 = scmp.ne.s32.totalorder %s55, %s56
      %p68 = scmp.eq.s32.totalorder %s25, 1
      %p69 = por %p67, %p68
      %p71 = scmp.ne.s32.totalorder %s56, %s70
      %p72 = scmp.eq.s32.totalorder %s25, 0
      %p73 = por %p71, %p72
      %s75 = sadd.s32 %s74, 1
      %p78 = scmp.eq.s32.totalorder %s19, 1
      %p79 = scmp.ne.s32.totalorder %s74, %s76
      %p80 = scmp.eq.s32.totalorder %s19, 0
      %p81 = por %p79, %p80
      %p82 = scmp.ne.s32.totalorder %s74, %s76
      %p83 = scmp.eq.s32.totalorder %s24, 1
      %p84 = por %p82, %p83
      %p85 = scmp.ne.s32.totalorder %s76, %s77
      %p86 = scmp.eq.s32.totalorder %s24, 0
      %p87 = por %p85, %p86
      %p88 = scmp.ne.s32.totalorder %s76, %s77
      %p89 = scmp.eq.s32.totalorder %s25, 1
      %p90 = por %p88, %p89
      %p92 = scmp.ne.s32.totalorder %s77, %s91
      %p93 = scmp.eq.s32.totalorder %s25, 0
      %p94 = por %p92, %p93
      %s96 = sadd.s32 %s95, 1
      %p99 = scmp.eq.s32.totalorder %s19, 1
      %p100 = scmp.ne.s32.totalorder %s95, %s97
      %p101 = scmp.eq.s32.totalorder %s19, 0
      %p102 = por %p100, %p101
      %p103 = scmp.ne.s32.totalorder %s95, %s97
      %p104 = scmp.eq.s32.totalorder %s24, 1
      %p105 = por %p103, %p104
      %p106 = scmp.ne.s32.totalorder %s97, %s98
      %p107 = scmp.eq.s32.totalorder %s24, 0
      %p108 = por %p106, %p107
      %p109 = scmp.ne.s32.totalorder %s97, %s98
      %p110 = scmp.eq.s32.totalorder %s25, 1
      %p111 = por %p109, %p110
      %p113 = scmp.ne.s32.totalorder %s98, %s112
      %p114 = scmp.eq.s32.totalorder %s25, 0
      %p115 = por %p113, %p114
      %s117 = sadd.s32 %s116, 1
      %p120 = scmp.eq.s32.totalorder %s19, 1
      %p121 = scmp.ne.s32.totalorder %s116, %s118
      %p122 = scmp.eq.s32.totalorder %s19, 0
      %p123 = por %p121, %p122
      %p124 = scmp.ne.s32.totalorder %s116, %s118
      %p125 = scmp.eq.s32.totalorder %s24, 1
      %p126 = por %p124, %p125
      %p127 = scmp.ne.s32.totalorder %s118, %s119
      %p128 = scmp.eq.s32.totalorder %s24, 0
      %p129 = por %p127, %p128
      %p130 = scmp.ne.s32.totalorder %s118, %s119
      %p131 = scmp.eq.s32.totalorder %s25, 1
      %p132 = por %p130, %p131
      %p134 = scmp.ne.s32.totalorder %s119, %s133
      %p135 = scmp.eq.s32.totalorder %s25, 0
      %p136 = por %p134, %p135
      %s138 = sadd.s32 %s137, 1
      %p141 = scmp.eq.s32.totalorder %s19, 1
      %p142 = scmp.ne.s32.totalorder %s137, %s139
      %p143 = scmp.eq.s32.totalorder %s19, 0
      %p144 = por %p142, %p143
      %p145 = scmp.ne.s32.totalorder %s137, %s139
      %p146 = scmp.eq.s32.totalorder %s24, 1
      %p147 = por %p145, %p146
      %p148 = scmp.ne.s32.totalorder %s139, %s140
      %p149 = scmp.eq.s32.totalorder %s24, 0
      %p150 = por %p148, %p149
      %p151 = scmp.ne.s32.totalorder %s139, %s140
      %p152 = scmp.eq.s32.totalorder %s25, 1
      %p153 = por %p151, %p152
      %p155 = scmp.ne.s32.totalorder %s140, %s154
      %p156 = scmp.eq.s32.totalorder %s25, 0
      %p157 = por %p155, %p156
      %s159 = sadd.s32 %s158, 1
      %p162 = scmp.eq.s32.totalorder %s19, 1
      %p163 = scmp.ne.s32.totalorder %s158, %s160
      %p164 = scmp.eq.s32.totalorder %s19, 0
      %p165 = por %p163, %p164
      %p166 = scmp.ne.s32.totalorder %s158, %s160
      %p167 = scmp.eq.s32.totalorder %s24, 1
      %p168 = por %p166, %p167
      %p169 = scmp.ne.s32.totalorder %s160, %s161
      %p170 = scmp.eq.s32.totalorder %s24, 0
      %p171 = por %p169, %p170
      %p172 = scmp.ne.s32.totalorder %s160, %s161
      %p173 = scmp.eq.s32.totalorder %s25, 1
      %p174 = por %p172, %p173
      %p176 = scmp.ne.s32.totalorder %s161, %s175
      %p177 = scmp.eq.s32.totalorder %s25, 0
      %p178 = por %p176, %p177
      %s179 = ssub.s32 %s19, %s26
      %p180 = scmp.eq.s32.totalorder %s179, 0
      %s182 = sadd.s32 %s181, 1
      %s183 = scalar_select %p180, %s181, %s182
      %p186 = pneg %p180
      %p187 = scmp.eq.s32.totalorder %s19, 1
      %p188 = por %p186, %p187
      %p189 = scmp.ne.s32.totalorder %s181, %s184
      %p190 = scmp.eq.s32.totalorder %s19, 0
      %p191 = por %p189, %p190
      %p192 = scmp.ne.s32.totalorder %s181, %s184
      %p193 = scmp.eq.s32.totalorder %s24, 1
      %p194 = por %p192, %p193
      %p195 = scmp.ne.s32.totalorder %s184, %s185
      %p196 = scmp.eq.s32.totalorder %s24, 0
      %p197 = por %p195, %p196
      %p198 = scmp.ne.s32.totalorder %s184, %s185
      %p199 = scmp.eq.s32.totalorder %s25, 1
      %p200 = por %p198, %p199
      %p202 = scmp.ne.s32.totalorder %s185, %s201
      %p203 = scmp.eq.s32.totalorder %s25, 0
      %p204 = por %p202, %p203
      %p205 = scmp.le.s32.totalorder 1, %s19
      %p206 = scmp.lt.s32.totalorder %s19, 3
      %p207 = pnand %p205, %p206
      %p208 = pneg %p207
      // Predicated region
      $region9: #{tpu_custom_call.1} parent=5 // pred_check
        _
      $region10: #{tpu_custom_call.1} parent=5 // pred_check_branch
        %210 = sbr.rel (%p207) target = $region12
      $region11: #{tpu_custom_call.1} parent=5 // pred_region
        %s211 = ssub.s32 %s19, 1
        // Predicated region
        $region13: #{tpu_custom_call.1} parent=11 // pred_check
          %p212 = pneg %p66
        $region14: #{tpu_custom_call.1} parent=11 // pred_check_branch
          %214 = sbr.rel (%p212) target = $region16
        $region15: #{tpu_custom_call.1} parent=11 // pred_region
          _
        $region16: #{tpu_custom_call.1} parent=11 // pred_fallthru
          _
        // Predicated region
        $region17: #{tpu_custom_call.1} parent=11 // pred_check
          %p215 = pneg %p87
        $region18: #{tpu_custom_call.1} parent=11 // pred_check_branch
          %217 = sbr.rel (%p215) target = $region20
        $region19: #{tpu_custom_call.1} parent=11 // pred_region
          _
        $region20: #{tpu_custom_call.1} parent=11 // pred_fallthru
          _
        // Predicated region
        $region21: #{tpu_custom_call.1} parent=11 // pred_check
          %p218 = pneg %p108
        $region22: #{tpu_custom_call.1} parent=11 // pred_check_branch
          %220 = sbr.rel (%p218) target = $region24
        $region23: #{tpu_custom_call.1} parent=11 // pred_region
          _
        $region24: #{tpu_custom_call.1} parent=11 // pred_fallthru
          _
        // Predicated region
        $region25: #{tpu_custom_call.1} parent=11 // pred_check
          %p221 = pneg %p129
        $region26: #{tpu_custom_call.1} parent=11 // pred_check_branch
          %223 = sbr.rel (%p221) target = $region28
        $region27: #{tpu_custom_call.1} parent=11 // pred_region
          _
        $region28: #{tpu_custom_call.1} parent=11 // pred_fallthru
          _
        // Predicated region
        $region29: #{tpu_custom_call.1} parent=11 // pred_check
          %p224 = pneg %p150
        $region30: #{tpu_custom_call.1} parent=11 // pred_check_branch
          %226 = sbr.rel (%p224) target = $region32
        $region31: #{tpu_custom_call.1} parent=11 // pred_region
          _
        $region32: #{tpu_custom_call.1} parent=11 // pred_fallthru
          _
        // Predicated region
        $region33: #{tpu_custom_call.1} parent=11 // pred_check
          %p227 = pneg %p171
        $region34: #{tpu_custom_call.1} parent=11 // pred_check_branch
          %229 = sbr.rel (%p227) target = $region36
        $region35: #{tpu_custom_call.1} parent=11 // pred_region
          _
        $region36: #{tpu_custom_call.1} parent=11 // pred_fallthru
          _
      $region12: #{tpu_custom_call.1} parent=5 // pred_fallthru
        _
      %p230 = scmp.lt.s32.totalorder %s19, 2
      // Predicated region
      $region37: #{tpu_custom_call.1} parent=5 // pred_check
        %p231 = pneg %p230
      $region38: #{tpu_custom_call.1} parent=5 // pred_check_branch
        %233 = sbr.rel (%p231) target = $region40
      $region39: #{tpu_custom_call.1} parent=5 // pred_region
        // Predicated region
        $region41: #{tpu_custom_call.1} parent=39 // pred_check
          %p234 = pneg %p39
        $region42: #{tpu_custom_call.1} parent=39 // pred_check_branch
          %236 = sbr.rel (%p234) target = $region44
        $region43: #{tpu_custom_call.1} parent=39 // pred_region
          %s237 = sand.u32 %s29, 1
          %s238 = scalar_lea.sflag [#allocation3], %s237
          %s239 = sand.u32 %s29, 1
          %s240 = smul.addr %s239, 512
          %s241 = scalar_lea.vmem [#allocation2], %s240
          %s242 = smul.u32 32, %s19
          %s243 = ssub.s32 38, %s242
          %p244 = scmp.lt.s32.totalorder %s243, 32
          %s245 = scalar_select %p244, %s243, 32
          %s246 = smul.u32 128, %s245
          %s247 = smul.u32 %s246, 2
          %s249 = ssub.s32 8192, %s247
          %250 = vsyncadd %s238, %s249
          %p251 = scmp.ne.s32.totalorder 0, %s247
          %s252 = smul.addr %s242, 2
          %s253 = smul.addr %s252, 128
          %s254 = scalar_lea.hbm %s0, %s253
          %s255 = smul.u32 16, %s245
          %s256 = sshll.u32 %s241, 4
          %s257 = int_to_ptr.vmem [resolvable:$true] %s256
          %s258 = sshll.u32 %s255, 4
          %262 = dma.hbm_to_vmem [thread:$0]  (%p251), %s254, %s258, %s257, %s238, 256, 256, 16
        $region44: #{tpu_custom_call.1} parent=39 // pred_fallthru
          _
      $region40: #{tpu_custom_call.1} parent=5 // pred_fallthru
        _
      %p263 = scmp.le.s32.totalorder 1, %s19
      %p264 = scmp.lt.s32.totalorder %s19, 3
      %p265 = pnand %p263, %p264
      %p266 = pneg %p265
      // Predicated region
      $region45: #{tpu_custom_call.1} parent=5 // pred_check
        _
      $region46: #{tpu_custom_call.1} parent=5 // pred_check_branch
        %268 = sbr.rel (%p265) target = $region48
      $region47: #{tpu_custom_call.1} parent=5 // pred_region
        %s269 = ssub.s32 %s19, 1
        %s270 = sand.u32 %s32, 1
        %s271 = scalar_lea.sflag [#allocation3], %s270
        %s272 = sand.u32 %s32, 1
        %s273 = smul.addr %s272, 512
        %s274 = scalar_lea.vmem [#allocation2], %s273
        // Predicated region
        $region49: #{tpu_custom_call.1} parent=47 // pred_check
          %p275 = pneg %p45
        $region50: #{tpu_custom_call.1} parent=47 // pred_check_branch
          %277 = sbr.rel (%p275) target = $region52
        $region51: #{tpu_custom_call.1} parent=47 // pred_region
          %278 = dma.done %s271, 8192
        $region52: #{tpu_custom_call.1} parent=47 // pred_fallthru
          _
        %s279 = sand.u32 %s32, 1
        %s280 = scalar_lea.sflag [#allocation3], %s279
        %s281 = sand.u32 %s32, 1
        %s282 = smul.addr %s281, 512
        %s283 = scalar_lea.vmem [#allocation2], %s282
        %p284 = pneg %p45
        %p285 = pneg %p42
        %p286 = pneg %p66
        %p287 = pneg %p63
        %p288 = pneg %p87
        %p289 = pneg %p84
        %p290 = pneg %p108
        %p291 = pneg %p105
        %p292 = pneg %p129
        %p293 = pneg %p126
        %p294 = pneg %p150
        %p295 = pneg %p147
        %p296 = pneg %p171
        %p297 = pneg %p168
        %p298 = pneg %p197
        %p299 = pneg %p194
        %s300 = sand.u32 %s184, 1
        %s301 = scalar_lea.sflag [#allocation4], %s300
        %s302 = sand.u32 %s184, 1
        %s303 = smul.addr %s302, 8
        %s304 = scalar_lea.vmem [#allocation5], %s303
        %s305 = smul.u32 32, %s24
        %s306 = ssub.s32 38, %s305
        %p307 = scmp.lt.s32.totalorder %s306, 32
        %s308 = scalar_select %p307, %s306, 32
        %s309 = smul.u32 128, %s308
        %s310 = smul.u32 %s309, 2
        %s311 = smul.u32 2, %s24
        %s312 = ssub.s32 3, %s311
        %p313 = scmp.lt.s32.totalorder %s312, 2
        %s314 = scalar_select %p313, %s312, 2
        %s315 = smul.u32 64, %s314
        %v316 = vld [vmem:[%s274] sm:$0xff]
        %v317 = vld [vmem:[%s274 + $0x8] sm:$0xff]
        %v318 = vld [vmem:[%s274 + $0x10] sm:$0xff]
        %v319 = vld [vmem:[%s274 + $0x18] sm:$0xff]
        %v320 = vld [vmem:[%s274 + $0x20] sm:$0xff]
        %v321 = vld [vmem:[%s274 + $0x28] sm:$0xff]
        %v322 = vld [vmem:[%s274 + $0x30] sm:$0xff]
        %v323 = vld [vmem:[%s274 + $0x38] sm:$0xff]
        %v324 = vld [vmem:[%s274 + $0x40] sm:$0xff]
        %v325 = vld [vmem:[%s274 + $0x48] sm:$0xff]
        %v326 = vld [vmem:[%s274 + $0x50] sm:$0xff]
        %v327 = vld [vmem:[%s274 + $0x58] sm:$0xff]
        %v328 = vld [vmem:[%s274 + $0x60] sm:$0xff]
        %v329 = vld [vmem:[%s274 + $0x68] sm:$0xff]
        %v330 = vld [vmem:[%s274 + $0x70] sm:$0xff]
        %v331 = vld [vmem:[%s274 + $0x78] sm:$0xff]
        %v332 = vld [vmem:[%s274 + $0x80] sm:$0xff]
        %v333 = vld [vmem:[%s274 + $0x88] sm:$0xff]
        %v334 = vld [vmem:[%s274 + $0x90] sm:$0xff]
        %v335 = vld [vmem:[%s274 + $0x98] sm:$0xff]
        %v336 = vld [vmem:[%s274 + $0xa0] sm:$0xff]
        %v337 = vld [vmem:[%s274 + $0xa8] sm:$0xff]
        %v338 = vld [vmem:[%s274 + $0xb0] sm:$0xff]
        %v339 = vld [vmem:[%s274 + $0xb8] sm:$0xff]
        %v340 = vld [vmem:[%s274 + $0xc0] sm:$0xff]
        %v341 = vld [vmem:[%s274 + $0xc8] sm:$0xff]
        %v342 = vld [vmem:[%s274 + $0xd0] sm:$0xff]
        %v343 = vld [vmem:[%s274 + $0xd8] sm:$0xff]
        %v344 = vld [vmem:[%s274 + $0xe0] sm:$0xff]
        %v345 = vld [vmem:[%s274 + $0xe8] sm:$0xff]
        %v346 = vld [vmem:[%s274 + $0xf0] sm:$0xff]
        %v347 = vld [vmem:[%s274 + $0xf8] sm:$0xff]
        %v348 = vld [vmem:[%s274 + $0x100] sm:$0xff]
        %v349 = vld [vmem:[%s274 + $0x108] sm:$0xff]
        %v350 = vld [vmem:[%s274 + $0x110] sm:$0xff]
        %v351 = vld [vmem:[%s274 + $0x118] sm:$0xff]
        %v352 = vld [vmem:[%s274 + $0x120] sm:$0xff]
        %v353 = vld [vmem:[%s274 + $0x128] sm:$0xff]
        %v354 = vld [vmem:[%s274 + $0x130] sm:$0xff]
        %v355 = vld [vmem:[%s274 + $0x138] sm:$0xff]
        %v356 = vld [vmem:[%s274 + $0x140] sm:$0xff]
        %v357 = vld [vmem:[%s274 + $0x148] sm:$0xff]
        %v358 = vld [vmem:[%s274 + $0x150] sm:$0xff]
        %v359 = vld [vmem:[%s274 + $0x158] sm:$0xff]
        %v360 = vld [vmem:[%s274 + $0x160] sm:$0xff]
        %v361 = vld [vmem:[%s274 + $0x168] sm:$0xff]
        %v362 = vld [vmem:[%s274 + $0x170] sm:$0xff]
        %v363 = vld [vmem:[%s274 + $0x178] sm:$0xff]
        %v364 = vld [vmem:[%s274 + $0x180] sm:$0xff]
        %v365 = vld [vmem:[%s274 + $0x188] sm:$0xff]
        %v366 = vld [vmem:[%s274 + $0x190] sm:$0xff]
        %v367 = vld [vmem:[%s274 + $0x198] sm:$0xff]
        %v368 = vld [vmem:[%s274 + $0x1a0] sm:$0xff]
        %v369 = vld [vmem:[%s274 + $0x1a8] sm:$0xff]
        %v370 = vld [vmem:[%s274 + $0x1b0] sm:$0xff]
        %v371 = vld [vmem:[%s274 + $0x1b8] sm:$0xff]
        %v372 = vld [vmem:[%s274 + $0x1c0] sm:$0xff]
        %v373 = vld [vmem:[%s274 + $0x1c8] sm:$0xff]
        %v374 = vld [vmem:[%s274 + $0x1d0] sm:$0xff]
        %v375 = vld [vmem:[%s274 + $0x1d8] sm:$0xff]
        %v376 = vld [vmem:[%s274 + $0x1e0] sm:$0xff]
        %v377 = vld [vmem:[%s274 + $0x1e8] sm:$0xff]
        %v378 = vld [vmem:[%s274 + $0x1f0] sm:$0xff]
        %v379 = vld [vmem:[%s274 + $0x1f8] sm:$0xff]
        %v380 = vld [vmem:[%s1] sm:$0xff]
        %v381 = vld [vmem:[%s1 + $0x8] sm:$0xff]
        %v382 = vld [vmem:[%s1 + $0x10] sm:$0xff]
        %v383 = vld [vmem:[%s1 + $0x18] sm:$0xff]
        %v384 = vld [vmem:[%s1 + $0x20] sm:$0xff]
        %v385 = vld [vmem:[%s1 + $0x28] sm:$0xff]
        %v386 = vld [vmem:[%s1 + $0x30] sm:$0xff]
        %v387 = vld [vmem:[%s1 + $0x38] sm:$0xff]
        %v388 = vld [vmem:[%s1 + $0x40] sm:$0xff]
        %v389 = vld [vmem:[%s1 + $0x48] sm:$0xff]
        %v390 = vld [vmem:[%s1 + $0x50] sm:$0xff]
        %v391 = vld [vmem:[%s1 + $0x58] sm:$0xff]
        %v392 = vld [vmem:[%s1 + $0x60] sm:$0xff]
        %v393 = vld [vmem:[%s1 + $0x68] sm:$0xff]
        %v394 = vld [vmem:[%s1 + $0x70] sm:$0xff]
        %v395 = vld [vmem:[%s1 + $0x78] sm:$0xff]
        %v396 = vld [vmem:[%s1 + $0x80] sm:$0xff]
        %v397 = vld [vmem:[%s1 + $0x88] sm:$0xff]
        %v398 = vld [vmem:[%s1 + $0x90] sm:$0xff]
        %v399 = vld [vmem:[%s1 + $0x98] sm:$0xff]
        %v400 = vld [vmem:[%s1 + $0xa0] sm:$0xff]
        %v401 = vld [vmem:[%s1 + $0xa8] sm:$0xff]
        %v402 = vld [vmem:[%s1 + $0xb0] sm:$0xff]
        %v403 = vld [vmem:[%s1 + $0xb8] sm:$0xff]
        %v404 = vld [vmem:[%s1 + $0xc0] sm:$0xff]
        %v405 = vld [vmem:[%s1 + $0xc8] sm:$0xff]
        %v406 = vld [vmem:[%s1 + $0xd0] sm:$0xff]
        %v407 = vld [vmem:[%s1 + $0xd8] sm:$0xff]
        %v408 = vld [vmem:[%s1 + $0xe0] sm:$0xff]
        %v409 = vld [vmem:[%s1 + $0xe8] sm:$0xff]
        %v410 = vld [vmem:[%s1 + $0xf0] sm:$0xff]
        %v411 = vld [vmem:[%s1 + $0xf8] sm:$0xff]
        %v412 = vld [vmem:[%s2] sm:$0x1]
        %v414 = vlaneseq
        %v415 = vshrl.u32 %v414, 7
        %v416 = vsub.s32 0, %v415
        %v417 = vrot.slane %v412, %v416
        %419 = vmatprep.subr.mxu0 0.0
        %420 = vmatpush1.msra.mxu0 %v380
        %421 = vmatprep.subr.mxu0 0.0
        %422 = vmatpush1.msra.mxu0 %v381
        %423 = vmatprep.subr.mxu0 0.0
        %424 = vmatpush1.msra.mxu0 %v382
        %425 = vmatprep.subr.mxu0 0.0
        %426 = vmatpush1.msra.mxu0 %v383
        %427 = vmatprep.subr.mxu0 0.0
        %428 = vmatpush1.msra.mxu0 %v384
        %429 = vmatprep.subr.mxu0 0.0
        %430 = vmatpush1.msra.mxu0 %v385
        %431 = vmatprep.subr.mxu0 0.0
        %432 = vmatpush1.msra.mxu0 %v386
        %433 = vmatprep.subr.mxu0 0.0
        %434 = vmatpush1.msra.mxu0 %v387
        %435 = vmatprep.subr.mxu0 0.0
        %436 = vmatpush1.msra.mxu0 %v388
        %437 = vmatprep.subr.mxu0 0.0
        %438 = vmatpush1.msra.mxu0 %v389
        %439 = vmatprep.subr.mxu0 0.0
        %440 = vmatpush1.msra.mxu0 %v390
        %441 = vmatprep.subr.mxu0 0.0
        %442 = vmatpush1.msra.mxu0 %v391
        %443 = vmatprep.subr.mxu0 0.0
        %444 = vmatpush1.msra.mxu0 %v392
        %445 = vmatprep.subr.mxu0 0.0
        %446 = vmatpush1.msra.mxu0 %v393
        %447 = vmatprep.subr.mxu0 0.0
        %448 = vmatpush1.msra.mxu0 %v394
        %449 = vmatprep.subr.mxu0 0.0
        %450 = vmatpush1.msra.mxu0 %v395
        %451 = vmatprep.subr.mxu0 0.0
        %452 = vmatpush1.msra.mxu0 %v396
        %453 = vmatprep.subr.mxu0 0.0
        %454 = vmatpush1.msra.mxu0 %v397
        %455 = vmatprep.subr.mxu0 0.0
        %456 = vmatpush1.msra.mxu0 %v398
        %457 = vmatprep.subr.mxu0 0.0
        %458 = vmatpush1.msra.mxu0 %v399
        %459 = vmatprep.subr.mxu0 0.0
        %460 = vmatpush1.msra.mxu0 %v400
        %461 = vmatprep.subr.mxu0 0.0
        %462 = vmatpush1.msra.mxu0 %v401
        %463 = vmatprep.subr.mxu0 0.0
        %464 = vmatpush1.msra.mxu0 %v402
        %465 = vmatprep.subr.mxu0 0.0
        %466 = vmatpush1.msra.mxu0 %v403
        %467 = vmatprep.subr.mxu0 0.0
        %468 = vmatpush1.msra.mxu0 %v404
        %469 = vmatprep.subr.mxu0 0.0
        %470 = vmatpush1.msra.mxu0 %v405
        %471 = vmatprep.subr.mxu0 0.0
        %472 = vmatpush1.msra.mxu0 %v406
        %473 = vmatprep.subr.mxu0 0.0
        %474 = vmatpush1.msra.mxu0 %v407
        %475 = vmatprep.subr.mxu0 0.0
        %476 = vmatpush1.msra.mxu0 %v408
        %477 = vmatprep.subr.mxu0 0.0
        %478 = vmatpush1.msra.mxu0 %v409
        %479 = vmatprep.subr.mxu0 0.0
        %480 = vmatpush1.msra.mxu0 %v410
        %481 = vmatprep.subr.mxu0 0.0
        %482 = vmatpush1.msra.mxu0 %v411
        %483 = vmatprep.mubr.f32.mxu0 %v317
        %484 = vmatmul.mubr.f32.gmra.mrb[0].mxu0 %v316
        %v485 = vpop.f32.mrb[0].mxu0
        %v486 = vadd.f32 %v417, %v485
        %v487 = vpop.f32.mrb[0].mxu0
        %488 = vmatprep.mubr.f32.mxu0 %v319
        %489 = vmatmul.mubr.f32.gmra.mrb[0].mxu0 %v318
        %v490 = vpop.f32.mrb[0].mxu0
        %v491 = vadd.f32 %v417, %v490
        %v492 = vpop.f32.mrb[0].mxu0
        %493 = vmatprep.mubr.f32.mxu0 %v321
        %494 = vmatmul.mubr.f32.gmra.mrb[0].mxu0 %v320
        %v495 = vpop.f32.mrb[0].mxu0
        %v496 = vadd.f32 %v417, %v495
        %v497 = vpop.f32.mrb[0].mxu0
        %498 = vmatprep.mubr.f32.mxu0 %v323
        %499 = vmatmul.mubr.f32.gmra.mrb[0].mxu0 %v322
        %v500 = vpop.f32.mrb[0].mxu0
        %v501 = vadd.f32 %v417, %v500
        %v502 = vpop.f32.mrb[0].mxu0
        %503 = vmatprep.mubr.f32.mxu0 %v325
        %504 = vmatmul.mubr.f32.gmra.mrb[0].mxu0 %v324
        %v505 = vpop.f32.mrb[0].mxu0
        %v506 = vadd.f32 %v417, %v505
        %v507 = vpop.f32.mrb[0].mxu0
        %508 = vmatprep.mubr.f32.mxu0 %v327
        %509 = vmatmul.mubr.f32.gmra.mrb[0].mxu0 %v326
        %v510 = vpop.f32.mrb[0].mxu0
        %v511 = vadd.f32 %v417, %v510
        %v512 = vpop.f32.mrb[0].mxu0
        %513 = vmatprep.mubr.f32.mxu0 %v329
        %514 = vmatmul.mubr.f32.gmra.mrb[0].mxu0 %v328
        %v515 = vpop.f32.mrb[0].mxu0
        %v516 = vadd.f32 %v417, %v515
        %v517 = vpop.f32.mrb[0].mxu0
        %518 = vmatprep.mubr.f32.mxu0 %v331
        %519 = vmatmul.mubr.f32.gmra.mrb[0].mxu0 %v330
        %v520 = vpop.f32.mrb[0].mxu0
        %v521 = vadd.f32 %v417, %v520
        %v522 = vpop.f32.mrb[0].mxu0
        %523 = vmatprep.mubr.f32.mxu0 %v333
        %524 = vmatmul.mubr.f32.gmra.mrb[0].mxu0 %v332
        %v525 = vpop.f32.mrb[0].mxu0
        %v526 = vadd.f32 %v417, %v525
        %v527 = vpop.f32.mrb[0].mxu0
        %528 = vmatprep.mubr.f32.mxu0 %v335
        %529 = vmatmul.mubr.f32.gmra.mrb[0].mxu0 %v334
        %v530 = vpop.f32.mrb[0].mxu0
        %v531 = vadd.f32 %v417, %v530
        %v532 = vpop.f32.mrb[0].mxu0
        %533 = vmatprep.mubr.f32.mxu0 %v337
        %534 = vmatmul.mubr.f32.gmra.mrb[0].mxu0 %v336
        %v535 = vpop.f32.mrb[0].mxu0
        %v536 = vadd.f32 %v417, %v535
        %v537 = vpop.f32.mrb[0].mxu0
        %538 = vmatprep.mubr.f32.mxu0 %v339
        %539 = vmatmul.mubr.f32.gmra.mrb[0].mxu0 %v338
        %v540 = vpop.f32.mrb[0].mxu0
        %v541 = vadd.f32 %v417, %v540
        %v542 = vpop.f32.mrb[0].mxu0
        %543 = vmatprep.mubr.f32.mxu0 %v341
        %544 = vmatmul.mubr.f32.gmra.mrb[0].mxu0 %v340
        %v545 = vpop.f32.mrb[0].mxu0
        %v546 = vadd.f32 %v417, %v545
        %v547 = vpop.f32.mrb[0].mxu0
        %548 = vmatprep.mubr.f32.mxu0 %v343
        %549 = vmatmul.mubr.f32.gmra.mrb[0].mxu0 %v342
        %v550 = vpop.f32.mrb[0].mxu0
        %v551 = vadd.f32 %v417, %v550
        %v552 = vpop.f32.mrb[0].mxu0
        %553 = vmatprep.mubr.f32.mxu0 %v345
        %554 = vmatmul.mubr.f32.gmra.mrb[0].mxu0 %v344
        %v555 = vpop.f32.mrb[0].mxu0
        %v556 = vadd.f32 %v417, %v555
        %v557 = vpop.f32.mrb[0].mxu0
        %558 = vmatprep.mubr.f32.mxu0 %v347
        %559 = vmatmul.mubr.f32.gmra.mrb[0].mxu0 %v346
        %v560 = vpop.f32.mrb[0].mxu0
        %v561 = vadd.f32 %v417, %v560
        %v562 = vpop.f32.mrb[0].mxu0
        %563 = vmatprep.mubr.f32.mxu0 %v349
        %564 = vmatmul.mubr.f32.gmra.mrb[0].mxu0 %v348
        %v565 = vpop.f32.mrb[0].mxu0
        %v566 = vadd.f32 %v417, %v565
        %v567 = vpop.f32.mrb[0].mxu0
        %568 = vmatprep.mubr.f32.mxu0 %v351
        %569 = vmatmul.mubr.f32.gmra.mrb[0].mxu0 %v350
        %v570 = vpop.f32.mrb[0].mxu0
        %v571 = vadd.f32 %v417, %v570
        %v572 = vpop.f32.mrb[0].mxu0
        %573 = vmatprep.mubr.f32.mxu0 %v353
        %574 = vmatmul.mubr.f32.gmra.mrb[0].mxu0 %v352
        %v575 = vpop.f32.mrb[0].mxu0
        %v576 = vadd.f32 %v417, %v575
        %v577 = vpop.f32.mrb[0].mxu0
        %578 = vmatprep.mubr.f32.mxu0 %v355
        %579 = vmatmul.mubr.f32.gmra.mrb[0].mxu0 %v354
        %v580 = vpop.f32.mrb[0].mxu0
        %v581 = vadd.f32 %v417, %v580
        %v582 = vpop.f32.mrb[0].mxu0
        %583 = vmatprep.mubr.f32.mxu0 %v357
        %584 = vmatmul.mubr.f32.gmra.mrb[0].mxu0 %v356
        %v585 = vpop.f32.mrb[0].mxu0
        %v586 = vadd.f32 %v417, %v585
        %v587 = vpop.f32.mrb[0].mxu0
        %588 = vmatprep.mubr.f32.mxu0 %v359
        %589 = vmatmul.mubr.f32.gmra.mrb[0].mxu0 %v358
        %v590 = vpop.f32.mrb[0].mxu0
        %v591 = vadd.f32 %v417, %v590
        %v592 = vpop.f32.mrb[0].mxu0
        %593 = vmatprep.mubr.f32.mxu0 %v361
        %594 = vmatmul.mubr.f32.gmra.mrb[0].mxu0 %v360
        %v595 = vpop.f32.mrb[0].mxu0
        %v596 = vadd.f32 %v417, %v595
        %v597 = vpop.f32.mrb[0].mxu0
        %598 = vmatprep.mubr.f32.mxu0 %v363
        %599 = vmatmul.mubr.f32.gmra.mrb[0].mxu0 %v362
        %v600 = vpop.f32.mrb[0].mxu0
        %v601 = vadd.f32 %v417, %v600
        %v602 = vpop.f32.mrb[0].mxu0
        %603 = vmatprep.mubr.f32.mxu0 %v365
        %604 = vmatmul.mubr.f32.gmra.mrb[0].mxu0 %v364
        %v605 = vpop.f32.mrb[0].mxu0
        %v606 = vadd.f32 %v417, %v605
        %v607 = vpop.f32.mrb[0].mxu0
        %608 = vmatprep.mubr.f32.mxu0 %v367
        %609 = vmatmul.mubr.f32.gmra.mrb[0].mxu0 %v366
        %v610 = vpop.f32.mrb[0].mxu0
        %v611 = vadd.f32 %v417, %v610
        %v612 = vpop.f32.mrb[0].mxu0
        %613 = vmatprep.mubr.f32.mxu0 %v369
        %614 = vmatmul.mubr.f32.gmra.mrb[0].mxu0 %v368
        %v615 = vpop.f32.mrb[0].mxu0
        %v616 = vadd.f32 %v417, %v615
        %v617 = vpop.f32.mrb[0].mxu0
        %618 = vmatprep.mubr.f32.mxu0 %v371
        %619 = vmatmul.mubr.f32.gmra.mrb[0].mxu0 %v370
        %v620 = vpop.f32.mrb[0].mxu0
        %v621 = vadd.f32 %v417, %v620
        %v622 = vpop.f32.mrb[0].mxu0
        %623 = vmatprep.mubr.f32.mxu0 %v373
        %624 = vmatmul.mubr.f32.gmra.mrb[0].mxu0 %v372
        %v625 = vpop.f32.mrb[0].mxu0
        %v626 = vadd.f32 %v417, %v625
        %v627 = vpop.f32.mrb[0].mxu0
        %628 = vmatprep.mubr.f32.mxu0 %v375
        %629 = vmatmul.mubr.f32.gmra.mrb[0].mxu0 %v374
        %v630 = vpop.f32.mrb[0].mxu0
        %v631 = vadd.f32 %v417, %v630
        %v632 = vpop.f32.mrb[0].mxu0
        %633 = vmatprep.mubr.f32.mxu0 %v377
        %634 = vmatmul.mubr.f32.gmra.mrb[0].mxu0 %v376
        %v635 = vpop.f32.mrb[0].mxu0
        %v636 = vadd.f32 %v417, %v635
        %v637 = vpop.f32.mrb[0].mxu0
        %638 = vmatprep.mubr.f32.mxu0 %v379
        %639 = vmatmul.mubr.f32.gmra.mrb[0].mxu0 %v378
        %v640 = vpop.f32.mrb[0].mxu0
        %v641 = vadd.f32 %v417, %v640
        %v642 = vpop.f32.mrb[0].mxu0
        %643 = vdwg.mxu0
        %v644 = vmax.f32 %v486, 0.0
        %v645 = vmax.f32 %v491, 0.0
        %v646 = vmax.f32 %v496, 0.0
        %v647 = vmax.f32 %v501, 0.0
        %v648 = vmax.f32 %v506, 0.0
        %v649 = vmax.f32 %v511, 0.0
        %v650 = vmax.f32 %v516, 0.0
        %v651 = vmax.f32 %v521, 0.0
        %v652 = vmax.f32 %v526, 0.0
        %v653 = vmax.f32 %v531, 0.0
        %v654 = vmax.f32 %v536, 0.0
        %v655 = vmax.f32 %v541, 0.0
        %v656 = vmax.f32 %v546, 0.0
        %v657 = vmax.f32 %v551, 0.0
        %v658 = vmax.f32 %v556, 0.0
        %v659 = vmax.f32 %v561, 0.0
        %v660 = vmax.f32 %v566, 0.0
        %v661 = vmax.f32 %v571, 0.0
        %v662 = vmax.f32 %v576, 0.0
        %v663 = vmax.f32 %v581, 0.0
        %v664 = vmax.f32 %v586, 0.0
        %v665 = vmax.f32 %v591, 0.0
        %v666 = vmax.f32 %v596, 0.0
        %v667 = vmax.f32 %v601, 0.0
        %v668 = vmax.f32 %v606, 0.0
        %v669 = vmax.f32 %v611, 0.0
        %v670 = vmax.f32 %v616, 0.0
        %v671 = vmax.f32 %v621, 0.0
        %v672 = vmax.f32 %v626, 0.0
        %v673 = vmax.f32 %v631, 0.0
        %v674 = vmax.f32 %v636, 0.0
        %v675 = vmax.f32 %v641, 0.0
        %v676 = vld [vmem:[%s3] sm:$0xff]
        %v677 = vld [vmem:[%s3 + $0x8] sm:$0xff]
        %v678 = vld [vmem:[%s4] sm:$0xff]
        %v679 = vld [vmem:[%s4 + $0x8] sm:$0xff]
        %681 = vset.pattern.permute.xlu0 0
        %682 = vperm.xlu0 %681, %v678
        %v683 = vpop.permute.xlu0 %682
        %686 = vset.pattern.permute.xlu0 0
        %687 = vperm.xlu0 %686, %v679
        %v688 = vpop.permute.xlu0 %687
        %vm690 = vcmask 261120
        %v692 = vsel %vm690, %v676, 0
        %v695 = vsel %vm690, %v677, 0
        %v698 = vsel %vm690, %v644, 0
        %v701 = vsel %vm690, %v645, 0
        %v704 = vsel %vm690, %v646, 0
        %v707 = vsel %vm690, %v647, 0
        %v710 = vsel %vm690, %v648, 0
        %v713 = vsel %vm690, %v649, 0
        %v716 = vsel %vm690, %v650, 0
        %v719 = vsel %vm690, %v651, 0
        %v722 = vsel %vm690, %v652, 0
        %v725 = vsel %vm690, %v653, 0
        %v728 = vsel %vm690, %v654, 0
        %v731 = vsel %vm690, %v655, 0
        %v734 = vsel %vm690, %v656, 0
        %v737 = vsel %vm690, %v657, 0
        %v740 = vsel %vm690, %v658, 0
        %v743 = vsel %vm690, %v659, 0
        %v746 = vsel %vm690, %v660, 0
        %v749 = vsel %vm690, %v661, 0
        %v752 = vsel %vm690, %v662, 0
        %v755 = vsel %vm690, %v663, 0
        %v758 = vsel %vm690, %v664, 0
        %v761 = vsel %vm690, %v665, 0
        %v764 = vsel %vm690, %v666, 0
        %v767 = vsel %vm690, %v667, 0
        %v770 = vsel %vm690, %v668, 0
        %v773 = vsel %vm690, %v669, 0
        %v776 = vsel %vm690, %v670, 0
        %v779 = vsel %vm690, %v671, 0
        %v782 = vsel %vm690, %v672, 0
        %v785 = vsel %vm690, %v673, 0
        %v788 = vsel %vm690, %v674, 0
        %v791 = vsel %vm690, %v675, 0
        %793 = vmatprep.subr.mxu0 0.0
        %794 = vmatpush1.xpose.msra.mxu0 %v698
        %795 = vmatprep.subr.mxu0 0.0
        %796 = vmatpush1.xpose.msra.mxu0 %v701
        %797 = vmatprep.subr.mxu0 0.0
        %798 = vmatpush1.xpose.msra.mxu0 %v704
        %799 = vmatprep.subr.mxu0 0.0
        %800 = vmatpush1.xpose.msra.mxu0 %v707
        %801 = vmatprep.subr.mxu0 0.0
        %802 = vmatpush1.xpose.msra.mxu0 %v710
        %803 = vmatprep.subr.mxu0 0.0
        %804 = vmatpush1.xpose.msra.mxu0 %v713
        %805 = vmatprep.subr.mxu0 0.0
        %806 = vmatpush1.xpose.msra.mxu0 %v716
        %807 = vmatprep.subr.mxu0 0.0
        %808 = vmatpush1.xpose.msra.mxu0 %v719
        %809 = vmatprep.subr.mxu0 0.0
        %810 = vmatpush1.xpose.msra.mxu0 %v722
        %811 = vmatprep.subr.mxu0 0.0
        %812 = vmatpush1.xpose.msra.mxu0 %v725
        %813 = vmatprep.subr.mxu0 0.0
        %814 = vmatpush1.xpose.msra.mxu0 %v728
        %815 = vmatprep.subr.mxu0 0.0
        %816 = vmatpush1.xpose.msra.mxu0 %v731
        %817 = vmatprep.subr.mxu0 0.0
        %818 = vmatpush1.xpose.msra.mxu0 %v734
        %819 = vmatprep.subr.mxu0 0.0
        %820 = vmatpush1.xpose.msra.mxu0 %v737
        %821 = vmatprep.subr.mxu0 0.0
        %822 = vmatpush1.xpose.msra.mxu0 %v740
        %823 = vmatprep.subr.mxu0 0.0
        %824 = vmatpush1.xpose.msra.mxu0 %v743
        %825 = vmatprep.subr.mxu0 0.0
        %826 = vmatpush1.xpose.msra.mxu0 %v746
        %827 = vmatprep.subr.mxu0 0.0
        %828 = vmatpush1.xpose.msra.mxu0 %v749
        %829 = vmatprep.subr.mxu0 0.0
        %830 = vmatpush1.xpose.msra.mxu0 %v752
        %831 = vmatprep.subr.mxu0 0.0
        %832 = vmatpush1.xpose.msra.mxu0 %v755
        %833 = vmatprep.subr.mxu0 0.0
        %834 = vmatpush1.xpose.msra.mxu0 %v758
        %835 = vmatprep.subr.mxu0 0.0
        %836 = vmatpush1.xpose.msra.mxu0 %v761
        %837 = vmatprep.subr.mxu0 0.0
        %838 = vmatpush1.xpose.msra.mxu0 %v764
        %839 = vmatprep.subr.mxu0 0.0
        %840 = vmatpush1.xpose.msra.mxu0 %v767
        %841 = vmatprep.subr.mxu0 0.0
        %842 = vmatpush1.xpose.msra.mxu0 %v770
        %843 = vmatprep.subr.mxu0 0.0
        %844 = vmatpush1.xpose.msra.mxu0 %v773
        %845 = vmatprep.subr.mxu0 0.0
        %846 = vmatpush1.xpose.msra.mxu0 %v776
        %847 = vmatprep.subr.mxu0 0.0
        %848 = vmatpush1.xpose.msra.mxu0 %v779
        %849 = vmatprep.subr.mxu0 0.0
        %850 = vmatpush1.xpose.msra.mxu0 %v782
        %851 = vmatprep.subr.mxu0 0.0
        %852 = vmatpush1.xpose.msra.mxu0 %v785
        %853 = vmatprep.subr.mxu0 0.0
        %854 = vmatpush1.xpose.msra.mxu0 %v788
        %855 = vmatprep.subr.mxu0 0.0
        %856 = vmatpush1.xpose.msra.mxu0 %v791
        %857 = vmatprep.mubr.f32.mxu0 0.0
        %858 = vmatmul.mubr.f32.gmra.mrb[0].mxu0 %v692
        %v859 = vpop.f32.mrb[0].mxu0
        %v860 = vadd.f32 %v683, %v859
        %v861 = vpop.f32.mrb[0].mxu0
        %v862 = vadd.f32 %v683, %v861
        %863 = vmatprep.mubr.f32.mxu0 0.0
        %864 = vmatmul.mubr.f32.gmra.mrb[0].mxu0 %v695
        %v865 = vpop.f32.mrb[0].mxu0
        %v866 = vadd.f32 %v688, %v865
        %v867 = vpop.f32.mrb[0].mxu0
        %v868 = vadd.f32 %v688, %v867
        %869 = vdwg.mxu0
        %v870 = vmax.f32 %v860, 0.0
        %v871 = vmax.f32 %v862, 0.0
        %v872 = vmax.f32 %v866, 0.0
        %v873 = vmax.f32 %v868, 0.0
        %v874 = vld [vmem:[%s5] sm:$0xf]
        %v875 = vld [vmem:[%s6] sm:$0xf]
        %877 = vset.pattern.permute.xlu0 0
        %878 = vperm.xlu0 %877, %v875
        %v879 = vpop.permute.xlu0 %878
        %vm881 = vcmask 130048
        %v883 = vsel %vm881, %v874, 0
        %885 = vmatprep.subr.mxu0 %v871
        %886 = vmatpush1.msra.mxu0 %v870
        %887 = vmatprep.subr.mxu0 %v873
        %888 = vmatpush1.msra.mxu0 %v872
        %889 = vmatprep.subr.mxu0 0.0
        %890 = vmatpush1.msra.mxu0 0.0
        %891 = vmatprep.subr.mxu0 0.0
        %892 = vmatpush1.msra.mxu0 0.0
        %893 = vmatprep.subr.mxu0 0.0
        %894 = vmatpush1.msra.mxu0 0.0
        %895 = vmatprep.subr.mxu0 0.0
        %896 = vmatpush1.msra.mxu0 0.0
        %897 = vmatprep.subr.mxu0 0.0
        %898 = vmatpush1.msra.mxu0 0.0
        %899 = vmatprep.subr.mxu0 0.0
        %900 = vmatpush1.msra.mxu0 0.0
        %901 = vmatprep.subr.mxu0 0.0
        %902 = vmatpush1.msra.mxu0 0.0
        %903 = vmatprep.subr.mxu0 0.0
        %904 = vmatpush1.msra.mxu0 0.0
        %905 = vmatprep.subr.mxu0 0.0
        %906 = vmatpush1.msra.mxu0 0.0
        %907 = vmatprep.subr.mxu0 0.0
        %908 = vmatpush1.msra.mxu0 0.0
        %909 = vmatprep.subr.mxu0 0.0
        %910 = vmatpush1.msra.mxu0 0.0
        %911 = vmatprep.subr.mxu0 0.0
        %912 = vmatpush1.msra.mxu0 0.0
        %913 = vmatprep.subr.mxu0 0.0
        %914 = vmatpush1.msra.mxu0 0.0
        %915 = vmatprep.subr.mxu0 0.0
        %916 = vmatpush1.msra.mxu0 0.0
        %917 = vmatprep.subr.mxu0 0.0
        %918 = vmatpush1.msra.mxu0 0.0
        %919 = vmatprep.subr.mxu0 0.0
        %920 = vmatpush1.msra.mxu0 0.0
        %921 = vmatprep.subr.mxu0 0.0
        %922 = vmatpush1.msra.mxu0 0.0
        %923 = vmatprep.subr.mxu0 0.0
        %924 = vmatpush1.msra.mxu0 0.0
        %925 = vmatprep.subr.mxu0 0.0
        %926 = vmatpush1.msra.mxu0 0.0
        %927 = vmatprep.subr.mxu0 0.0
        %928 = vmatpush1.msra.mxu0 0.0
        %929 = vmatprep.subr.mxu0 0.0
        %930 = vmatpush1.msra.mxu0 0.0
        %931 = vmatprep.subr.mxu0 0.0
        %932 = vmatpush1.msra.mxu0 0.0
        %933 = vmatprep.subr.mxu0 0.0
        %934 = vmatpush1.msra.mxu0 0.0
        %935 = vmatprep.subr.mxu0 0.0
        %936 = vmatpush1.msra.mxu0 0.0
        %937 = vmatprep.subr.mxu0 0.0
        %938 = vmatpush1.msra.mxu0 0.0
        %939 = vmatprep.subr.mxu0 0.0
        %940 = vmatpush1.msra.mxu0 0.0
        %941 = vmatprep.subr.mxu0 0.0
        %942 = vmatpush1.msra.mxu0 0.0
        %943 = vmatprep.subr.mxu0 0.0
        %944 = vmatpush1.msra.mxu0 0.0
        %945 = vmatprep.subr.mxu0 0.0
        %946 = vmatpush1.msra.mxu0 0.0
        %947 = vmatprep.subr.mxu0 0.0
        %948 = vmatpush1.msra.mxu0 0.0
        %949 = vmatprep.mubr.f32.mxu0 0.0
        %950 = vmatmul.mubr.f32.gmra.mrb[0].mxu0 %v883
        %v951 = vpop.f32.mrb[0].mxu0
        %v952 = vadd.f32 %v879, %v951
        %v953 = vpop.f32.mrb[0].mxu0
        %v954 = vadd.f32 %v879, %v953
        %955 = vdwg.mxu0
        %v958 = vcombine.low %v952, %v954
        %960 = vst [vmem:[%s304] sm:$0xff] %v958
        %s961 = sand.u32 %s184, 1
        %s962 = scalar_lea.sflag [#allocation4], %s961
        %s963 = sand.u32 %s184, 1
        %s964 = smul.addr %s963, 8
        %s965 = scalar_lea.vmem [#allocation5], %s964
        // Predicated region
        $region53: #{tpu_custom_call.1} parent=47 // pred_check
          %p966 = pneg %p194
        $region54: #{tpu_custom_call.1} parent=47 // pred_check_branch
          %968 = sbr.rel (%p966) target = $region56
        $region55: #{tpu_custom_call.1} parent=47 // pred_region
          %s969 = smul.u32 2, %s24
          %s970 = ssub.s32 3, %s969
          %p971 = scmp.lt.s32.totalorder %s970, 2
          %s972 = scalar_select %p971, %s970, 2
          %s973 = smul.u32 64, %s972
          %s975 = ssub.s32 128, %s973
          %976 = vsyncadd %s962, %s975
          %p977 = scmp.ne.s32.totalorder 0, %s973
          %s978 = smul.addr %s969, 64
          %s979 = scalar_lea.hbm %s7, %s978
          %s980 = smul.u32 %s972, 4
          %s981 = sshll.u32 %s980, 4
          %s982 = sshll.u32 %s965, 4
          %s983 = int_to_ptr.vmem [resolvable:$true] %s982
          %985 = dma.vmem_to_hbm [thread:$0]  (%p977), %s983, %s981, %s979, %s962
        $region56: #{tpu_custom_call.1} parent=47 // pred_fallthru
          _
      $region48: #{tpu_custom_call.1} parent=5 // pred_fallthru
        _
      %p986 = scmp.le.s32.totalorder 2, %s19
      // Predicated region
      $region57: #{tpu_custom_call.1} parent=5 // pred_check
        %p987 = pneg %p986
      $region58: #{tpu_custom_call.1} parent=5 // pred_check_branch
        %989 = sbr.rel (%p987) target = $region60
      $region59: #{tpu_custom_call.1} parent=5 // pred_region
        %s990 = ssub.s32 %s19, 2
        // Predicated region
        $region61: #{tpu_custom_call.1} parent=59 // pred_check
          %p991 = pneg %p200
        $region62: #{tpu_custom_call.1} parent=59 // pred_check_branch
          %993 = sbr.rel (%p991) target = $region64
        $region63: #{tpu_custom_call.1} parent=59 // pred_region
          %s994 = sand.u32 %s185, 1
          %s995 = scalar_lea.sflag [#allocation4], %s994
          %s996 = sand.u32 %s185, 1
          %s997 = smul.addr %s996, 8
          %s998 = scalar_lea.vmem [#allocation5], %s997
          %999 = dma.done %s995, 128
        $region64: #{tpu_custom_call.1} parent=59 // pred_fallthru
          _
      $region60: #{tpu_custom_call.1} parent=5 // pred_fallthru
        _
    $region6: #{tpu_custom_call.1} parent=1 // loop_footer
      %s23 = sadd.s32 1, %s19
    $region7: #{tpu_custom_call.1} parent=1 // loop_footer_branch
      %18 = sbr.rel target = $region3
    $region8: #{tpu_custom_call.1} parent=1 // loop_exit
      _
    %1000 = vsyncpa [#allocation3], 1
    %s1001 = scalar_lea.sflag [#allocation3], 1
    %1002 = vsyncpa %s1001, 1
    %1003 = vsyncpa [#allocation4], 1
    %s1004 = scalar_lea.sflag [#allocation4], 1
    %1005 = vsyncpa %s1004, 1

</llo_original>
